<compile_context>
chip_gen: v7x
topology: tpu7x:2x2x1
jax: 0.10.0
libtpu: 0.0.40
codegen_flags: <defaults>
</compile_context>

<pallas_src>
import functools

import jax
import jax.numpy as jnp
from jax.experimental import pallas as pl
from jax.experimental.pallas import tpu as pltpu


def _cdiv(a: int, b: int) -> int:
    return -(-a // b)


def _round_up(v: int, m: int) -> int:
    return _cdiv(v, m) * m


def _choose_row_tile(n: int, block_cols: int, itemsize: int, row_tile: int) -> int:
    """Row tile: multiple of 8, ~2 MiB per x/out buffer, even TC split on v7x."""
    n_pad = _round_up(max(n, 1), 8)
    target_bytes = 2 * 1024 * 1024
    cap = max(8, (target_bytes // max(block_cols * itemsize, 1)) // 8 * 8)
    tn = max(8, min(row_tile, cap, n_pad) // 8 * 8)
    steps = _cdiv(n, tn)
    if steps >= 2:
        # Even number of programs -> balanced split across the 2 TCs on v7x
        # (harmless on v5e/v6e which have a single TC).
        steps = _round_up(steps, 2)
        tn = max(8, _round_up(_cdiv(n, steps), 8))
    return tn


def _tile_vmem_bytes(rows: int, cols: int, itemsize: int) -> int:
    return _round_up(rows, 8) * _round_up(cols, 128) * itemsize


def _pos_enc_kernel(vals_ref, x_ref, o_ref, *, head_cols):
    """Process one (TN, C) row tile.

    vals_ref : VMEM (TN, 4) f32 = (sin(phi), cos(phi), r_norm, z_norm) per row
    x_ref    : VMEM (TN, C) x.dtype   (C = head slab, or full D in the
    o_ref    : VMEM (TN, C) x.dtype    non-aliased fallback)
    """
    tn = x_ref.shape[0]
    c = x_ref.shape[1]
    dh = head_cols                      # static: min(D, 128)

    vals = vals_ref[...]                # (TN, 4) f32

    # pos_enc is non-zero only in columns 0..3: build it over the head slab as
    # a sum of independent masked terms (ILP across the VALUs).
    col = jax.lax.broadcasted_iota(jnp.int32, (tn, dh), 1)
    head = (jnp.where(col == 0, vals[:, 0:1], 0.0)
            + jnp.where(col == 1, vals[:, 1:2], 0.0)
            + jnp.where(col == 2, vals[:, 2:3], 0.0)
            + jnp.where(col == 3, vals[:, 3:4], 0.0))      # (TN, dh) f32

    # Head slab: upcast in-register, add, store back in the native dtype.
    xh = x_ref[:, :dh].astype(jnp.float32)
    o_ref[:, :dh] = (xh + head).astype(o_ref.dtype)

    if c > dh:
        # Fallback path (output not aliased to x): columns >= 128 are a
        # straight copy.  Read per-region directly from the ref so the whole
        # tile is never live in vregs and the vld/vst slots can stream.
        o_ref[:, dh:] = x_ref[:, dh:]


def positional_encoding_forward(x: jax.Array, coords: jax.Array,
                                *, row_tile: int = 1024,
                                alias_output: bool = True) -> jax.Array:
    """x: [N, d_model] (any float dtype), coords: [N, 3] with columns (r, phi, z).

    If alias_output and d_model > 128, the output aliases x inside the
    pallas_call: only the first 128 columns are DMA'd and the tail keeps x's
    data.  Donate x (jax.jit(..., donate_argnums=(0,))) to realize the traffic
    saving; without donation XLA inserts a copy and the result is still correct.
    """
    N, D = x.shape
    assert coords.shape == (N, 3)
    assert D >= 4, "d_model must be >= 4 (forward writes columns 0..3)"

    # ---- Hoisted precompute on the tiny [N, 3] coords (fused by XLA) -------
    cf = coords.astype(jnp.float32)
    r, phi, z = cf[:, 0], cf[:, 1], cf[:, 2]
    eps = jnp.float32(1e-8)
    r_min = jnp.min(r)
    z_min = jnp.min(z)
    r_norm = (r - r_min) / (jnp.max(r) - r_min + eps)
    z_norm = (z - z_min) / (jnp.max(z) - z_min + eps)
    vals = jnp.stack([jnp.sin(phi), jnp.cos(phi), r_norm, z_norm],
                     axis=-1).astype(jnp.float32)          # (N, 4)

    head_cols = min(D, 128)
    use_alias = alias_output and D > 128
    block_cols = head_cols if use_alias else D

    itemsize = jnp.dtype(x.dtype).itemsize
    tn = _choose_row_tile(N, block_cols, itemsize, row_tile)
    grid = (pl.cdiv(N, tn),)

    # VMEM budget (double-buffered vals + x + out tiles) with headroom; safe on
    # v5e/v6e/v7x because the adaptive tile keeps each buffer ~2 MiB.
    vmem_need = 2 * (_tile_vmem_bytes(tn, 4, 4)
                     + 2 * _tile_vmem_bytes(tn, block_cols, itemsize))
    vmem_limit = int(min(48 << 20, max(16 << 20, 3 * vmem_need)))

    cost = pl.CostEstimate(
        flops=N * block_cols,
        transcendentals=0,
        bytes_accessed=2 * N * block_cols * itemsize + N * 4 * 4,
    )

    kernel = functools.partial(_pos_enc_kernel, head_cols=head_cols)

    out = pl.pallas_call(
        kernel,
        out_shape=jax.ShapeDtypeStruct((N, D), x.dtype),
        grid=grid,
        in_specs=[
            pl.BlockSpec((tn, 4), lambda i: (i, 0)),            # head values
            pl.BlockSpec((tn, block_cols), lambda i: (i, 0)),   # x slab
        ],
        out_specs=pl.BlockSpec((tn, block_cols), lambda i: (i, 0)),
        input_output_aliases={1: 0} if use_alias else {},
        compiler_params=pltpu.CompilerParams(
            dimension_semantics=("parallel",),
            vmem_limit_bytes=vmem_limit),
        cost_estimate=cost,
    )(vals, x)

    return out


# ----------------------------- test harness ---------------------------------

def _reference_forward(x, coords):
    r, phi, z = coords[:, 0], coords[:, 1], coords[:, 2]
    r_norm = (r - r.min()) / (r.max() - r.min() + 1e-8)
    z_norm = (z - z.min()) / (z.max() - z.min() + 1e-8)
    pos_enc = jnp.zeros_like(x)
    pos_enc = pos_enc.at[:, 0].set(jnp.sin(phi))
    pos_enc = pos_enc.at[:, 1].set(jnp.cos(phi))
    pos_enc = pos_enc.at[:, 2].set(r_norm)
    pos_enc = pos_enc.at[:, 3].set(z_norm)
    return x + pos_enc


def _make_inputs(key, n, d_model, dtype=jnp.float32):
    k_x, k_c = jax.random.split(key)
    x = jax.random.normal(k_x, (n, d_model), dtype=jnp.float32).astype(dtype)
    raw = jax.random.uniform(k_c, (n, 3), dtype=jnp.float32)
    coords = jnp.stack(
        [raw[:, 0] * 100.0,
         raw[:, 1] * 2.0 * jnp.pi - jnp.pi,
         raw[:, 2] * 400.0 - 200.0],
        axis=-1,
    )
    return x, coords


if __name__ == "__main__":
    key = jax.random.PRNGKey(0)
    k1, k2, k3, k4 = jax.random.split(key, 4)

    # Case 1: small d_model, f32 (single 128-lane slab path).
    x1, c1 = _make_inputs(k1, 64, 32)
    out1 = positional_encoding_forward(x1, c1)
    jax.block_until_ready(out1)
    ref1 = _reference_forward(x1, c1)
    assert out1.shape == (64, 32) and out1.dtype == x1.dtype
    assert jnp.allclose(out1, ref1, atol=1e-5, rtol=1e-5)

    # Case 2: bf16 input — native-dtype stream, no f32 round trip through HBM.
    x2, c2 = _make_inputs(k2, 128, 128, dtype=jnp.bfloat16)
    out2 = positional_encoding_forward(x2, c2)
    jax.block_until_ready(out2)
    ref2 = _reference_forward(x2.astype(jnp.float32), c2)
    assert out2.dtype == jnp.bfloat16
    assert jnp.allclose(out2.astype(jnp.float32), ref2, atol=3e-2, rtol=3e-2)

    # Case 3: d_model > 128 with output aliasing + donated x: only the first
    # 128 columns are DMA'd, the tail keeps x's data through the alias.
    x3, c3 = _make_inputs(k3, 256, 256)
    ref3 = _reference_forward(x3, c3)
    jax.block_until_ready(ref3)
    fwd3 = jax.jit(positional_encoding_forward, donate_argnums=(0,))
    out3 = fwd3(x3, c3)
    jax.block_until_ready(out3)
    assert out3.shape == (256, 256)
    assert jnp.allclose(out3, ref3, atol=1e-5, rtol=1e-5)

    # Case 4: d_model > 128 without aliasing (in-kernel tail copy), multiple
    # row tiles with a partial last tile.
    x4, c4 = _make_inputs(k4, 2100, 192)
    out4 = positional_encoding_forward(x4, c4, alias_output=False)
    jax.block_until_ready(out4)
    ref4 = _reference_forward(x4, c4)
    assert out4.shape == (2100, 192)
    assert jnp.allclose(out4, ref4, atol=1e-5, rtol=1e-5)

    print("KERNEL_OK")
</pallas_src>

<mosaic_0001>
module attributes {stable_mosaic.version = 11 : i64} {
  func.func @_pos_enc_kernel(%arg0: i32, %arg1: memref<64x4xf32, #tpu.memory_space<vmem>>, %arg2: memref<64x32xf32, #tpu.memory_space<vmem>>, %arg3: memref<64x32xf32, #tpu.memory_space<vmem>>) attributes {dimension_semantics = [#tpu.dimension_semantics<parallel>], iteration_bounds = array<i64: 1>, scalar_prefetch = 0 : i64, scratch_operands = 0 : i64, tpu.core_type = #tpu.core_type<tc>, window_params = [{transform_indices = @transform_0, window_bounds = array<i64: 64, 4>}, {transform_indices = @transform_1, window_bounds = array<i64: 64, 32>}, {transform_indices = @transform_2, window_bounds = array<i64: 64, 32>}]} {
    %c0 = arith.constant 0 : index
    %c0_0 = arith.constant 0 : index
    %0 = vector.load %arg1[%c0, %c0_0] : memref<64x4xf32, #tpu.memory_space<vmem>>, vector<64x4xf32>
    %1 = tpu.iota {dimensions = array<i32: 1>} : vector<64x32xi32>
    %c0_i32 = arith.constant 0 : i32
    %2 = vector.broadcast %c0_i32 : i32 to vector<64x32xi32>
    %3 = arith.cmpi eq, %1, %2 : vector<64x32xi32>
    %4 = vector.extract_strided_slice %0 {offsets = [0, 0], sizes = [64, 1], strides = [1, 1]} : vector<64x4xf32> to vector<64x1xf32>
    %cst = arith.constant 0.000000e+00 : f32
    %5 = vector.shape_cast %4 : vector<64x1xf32> to vector<64x1xf32>
    %6 = vector.broadcast %5 : vector<64x1xf32> to vector<64x32xf32>
    %7 = vector.broadcast %cst : f32 to vector<64x32xf32>
    %8 = arith.select %3, %6, %7 : vector<64x32xi1>, vector<64x32xf32>
    %c1_i32 = arith.constant 1 : i32
    %9 = vector.broadcast %c1_i32 : i32 to vector<64x32xi32>
    %10 = arith.cmpi eq, %1, %9 : vector<64x32xi32>
    %11 = vector.extract_strided_slice %0 {offsets = [0, 1], sizes = [64, 1], strides = [1, 1]} : vector<64x4xf32> to vector<64x1xf32>
    %cst_1 = arith.constant 0.000000e+00 : f32
    %12 = vector.shape_cast %11 : vector<64x1xf32> to vector<64x1xf32>
    %13 = vector.broadcast %12 : vector<64x1xf32> to vector<64x32xf32>
    %14 = vector.broadcast %cst_1 : f32 to vector<64x32xf32>
    %15 = arith.select %10, %13, %14 : vector<64x32xi1>, vector<64x32xf32>
    %16 = arith.addf %8, %15 : vector<64x32xf32>
    %c2_i32 = arith.constant 2 : i32
    %17 = vector.broadcast %c2_i32 : i32 to vector<64x32xi32>
    %18 = arith.cmpi eq, %1, %17 : vector<64x32xi32>
    %19 = vector.extract_strided_slice %0 {offsets = [0, 2], sizes = [64, 1], strides = [1, 1]} : vector<64x4xf32> to vector<64x1xf32>
    %cst_2 = arith.constant 0.000000e+00 : f32
    %20 = vector.shape_cast %19 : vector<64x1xf32> to vector<64x1xf32>
    %21 = vector.broadcast %20 : vector<64x1xf32> to vector<64x32xf32>
    %22 = vector.broadcast %cst_2 : f32 to vector<64x32xf32>
    %23 = arith.select %18, %21, %22 : vector<64x32xi1>, vector<64x32xf32>
    %24 = arith.addf %16, %23 : vector<64x32xf32>
    %c3_i32 = arith.constant 3 : i32
    %25 = vector.broadcast %c3_i32 : i32 to vector<64x32xi32>
    %26 = arith.cmpi eq, %1, %25 : vector<64x32xi32>
    %27 = vector.extract_strided_slice %0 {offsets = [0, 3], sizes = [64, 1], strides = [1, 1]} : vector<64x4xf32> to vector<64x1xf32>
    %cst_3 = arith.constant 0.000000e+00 : f32
    %28 = vector.shape_cast %27 : vector<64x1xf32> to vector<64x1xf32>
    %29 = vector.broadcast %28 : vector<64x1xf32> to vector<64x32xf32>
    %30 = vector.broadcast %cst_3 : f32 to vector<64x32xf32>
    %31 = arith.select %26, %29, %30 : vector<64x32xi1>, vector<64x32xf32>
    %32 = arith.addf %24, %31 : vector<64x32xf32>
    %c0_4 = arith.constant 0 : index
    %c0_5 = arith.constant 0 : index
    %33 = vector.load %arg2[%c0_4, %c0_5] : memref<64x32xf32, #tpu.memory_space<vmem>>, vector<64x32xf32>
    %34 = arith.addf %33, %32 : vector<64x32xf32>
    %c0_6 = arith.constant 0 : index
    %c0_7 = arith.constant 0 : index
    %35 = vector.load %arg3[%c0_6, %c0_7] : memref<64x32xf32, #tpu.memory_space<vmem>>, vector<64x32xf32>
    tpu.vector_store %arg3[%c0_6, %c0_7], %34 {strides = array<i32>} : memref<64x32xf32, #tpu.memory_space<vmem>>, vector<64x32xf32>,
    return
  }
  func.func @transform_0(%arg0: i32) -> (i32, i32) {
    %c0_i32 = arith.constant 0 : i32
    %c0_i32_0 = arith.constant 0 : i32
    return %arg0, %c0_i32 : i32, i32
  }
  func.func @transform_1(%arg0: i32) -> (i32, i32) {
    %c0_i32 = arith.constant 0 : i32
    %c0_i32_0 = arith.constant 0 : i32
    return %arg0, %c0_i32 : i32, i32
  }
  func.func @transform_2(%arg0: i32) -> (i32, i32) {
    %c0_i32 = arith.constant 0 : i32
    %c0_i32_0 = arith.constant 0 : i32
    return %arg0, %c0_i32 : i32, i32
  }
}

</mosaic_0001>

<llo_original>
// kernel: tpu_custom_call.1
$region0: #{tpu_custom_call.1}
  #allocation0 [shape = 'u32[]', space=smem, size = 0x4, offset = 0x4, fixed_abs, tag = 'smem constant byte address 0x4 - core index']
  #allocation1 [shape = 'u32[144,128]{1,0:T(1,128)}', space=vmem, size = 0x12000, scoped, tag = 'internal scratch']
  %s0 = inlined_call_operand.vmem [shape: f32[64,4], index: 0, kind: input, shape index: {}]
  %s1 = inlined_call_operand.vmem [shape: f32[64,32], index: 1, kind: input, shape index: {}]
  %s2 = inlined_call_operand.vmem [shape: f32[64,32], index: 2, kind: output, shape index: {}]
  %s3 = sld [smem:[#allocation0]]
  $region18: #{tpu_custom_call.1} parent=0
    _
  %s5 = ssub.s32 1, %s3
  %s6 = scalar_select 0, %s5, %s3
  // Predicated region
  $region2: #{tpu_custom_call.1} parent=0 // pred_check
    _
  $region3: #{tpu_custom_call.1} parent=0 // pred_check_branch
    %8 = sbr.rel (0) target = $region5
  $region4: #{tpu_custom_call.1} parent=0 // pred_region
    _
  $region5: #{tpu_custom_call.1} parent=0 // pred_fallthru
    _
  // Predicated region
  $region6: #{tpu_custom_call.1} parent=0 // pred_check
    _
  $region7: #{tpu_custom_call.1} parent=0 // pred_check_branch
    %10 = sbr.rel (0) target = $region9
  $region8: #{tpu_custom_call.1} parent=0 // pred_region
    _
  $region9: #{tpu_custom_call.1} parent=0 // pred_fallthru
    _
  %v11 = vld [vmem:[%s0] sm:$0xff]
  %v12 = vld [vmem:[%s0 + $0x8] sm:$0xff]
  %v13 = vld [vmem:[%s0 + $0x10] sm:$0xff]
  %v14 = vld [vmem:[%s0 + $0x18] sm:$0xff]
  %v15 = vld [vmem:[%s0 + $0x20] sm:$0xff]
  %v16 = vld [vmem:[%s0 + $0x28] sm:$0xff]
  %v17 = vld [vmem:[%s0 + $0x30] sm:$0xff]
  %v18 = vld [vmem:[%s0 + $0x38] sm:$0xff]
  %v19 = vlaneseq
  %v20 = vand.u32 %v19, 127
  %vm21 = vcmp.eq.s32.totalorder %v20, 0
  %23 = vset.pattern.permute.xlu0 0
  %24 = vperm.xlu0 %23, %v11
  %v25 = vpop.permute.xlu0 %24
  %28 = vset.pattern.permute.xlu0 0
  %29 = vperm.xlu0 %28, %v12
  %v30 = vpop.permute.xlu0 %29
  %33 = vset.pattern.permute.xlu0 0
  %34 = vperm.xlu0 %33, %v13
  %v35 = vpop.permute.xlu0 %34
  %38 = vset.pattern.permute.xlu0 0
  %39 = vperm.xlu0 %38, %v14
  %v40 = vpop.permute.xlu0 %39
  %43 = vset.pattern.permute.xlu0 0
  %44 = vperm.xlu0 %43, %v15
  %v45 = vpop.permute.xlu0 %44
  %48 = vset.pattern.permute.xlu0 0
  %49 = vperm.xlu0 %48, %v16
  %v50 = vpop.permute.xlu0 %49
  %53 = vset.pattern.permute.xlu0 0
  %54 = vperm.xlu0 %53, %v17
  %v55 = vpop.permute.xlu0 %54
  %58 = vset.pattern.permute.xlu0 0
  %59 = vperm.xlu0 %58, %v18
  %v60 = vpop.permute.xlu0 %59
  %v62 = vsel %vm21, %v25, 0.0
  %v63 = vsel %vm21, %v30, 0.0
  %v64 = vsel %vm21, %v35, 0.0
  %v65 = vsel %vm21, %v40, 0.0
  %v66 = vsel %vm21, %v45, 0.0
  %v67 = vsel %vm21, %v50, 0.0
  %v68 = vsel %vm21, %v55, 0.0
  %v69 = vsel %vm21, %v60, 0.0
  %vm70 = vcmp.eq.s32.totalorder %v20, 1
  %71 = vset.pattern.permute.xlu0 1
  %72 = vperm.xlu0 %71, %v11
  %v73 = vpop.permute.xlu0 %72
  %75 = vset.pattern.permute.xlu0 1
  %76 = vperm.xlu0 %75, %v12
  %v77 = vpop.permute.xlu0 %76
  %79 = vset.pattern.permute.xlu0 1
  %80 = vperm.xlu0 %79, %v13
  %v81 = vpop.permute.xlu0 %80
  %83 = vset.pattern.permute.xlu0 1
  %84 = vperm.xlu0 %83, %v14
  %v85 = vpop.permute.xlu0 %84
  %87 = vset.pattern.permute.xlu0 1
  %88 = vperm.xlu0 %87, %v15
  %v89 = vpop.permute.xlu0 %88
  %91 = vset.pattern.permute.xlu0 1
  %92 = vperm.xlu0 %91, %v16
  %v93 = vpop.permute.xlu0 %92
  %95 = vset.pattern.permute.xlu0 1
  %96 = vperm.xlu0 %95, %v17
  %v97 = vpop.permute.xlu0 %96
  %99 = vset.pattern.permute.xlu0 1
  %100 = vperm.xlu0 %99, %v18
  %v101 = vpop.permute.xlu0 %100
  %v103 = vsel %vm70, %v73, 0.0
  %v104 = vsel %vm70, %v77, 0.0
  %v105 = vsel %vm70, %v81, 0.0
  %v106 = vsel %vm70, %v85, 0.0
  %v107 = vsel %vm70, %v89, 0.0
  %v108 = vsel %vm70, %v93, 0.0
  %v109 = vsel %vm70, %v97, 0.0
  %v110 = vsel %vm70, %v101, 0.0
  %v111 = vadd.f32 %v62, %v103
  %v112 = vadd.f32 %v63, %v104
  %v113 = vadd.f32 %v64, %v105
  %v114 = vadd.f32 %v65, %v106
  %v115 = vadd.f32 %v66, %v107
  %v116 = vadd.f32 %v67, %v108
  %v117 = vadd.f32 %v68, %v109
  %v118 = vadd.f32 %v69, %v110
  %vm119 = vcmp.eq.s32.totalorder %v20, 2
  %120 = vset.pattern.permute.xlu0 2
  %121 = vperm.xlu0 %120, %v11
  %v122 = vpop.permute.xlu0 %121
  %124 = vset.pattern.permute.xlu0 2
  %125 = vperm.xlu0 %124, %v12
  %v126 = vpop.permute.xlu0 %125
  %128 = vset.pattern.permute.xlu0 2
  %129 = vperm.xlu0 %128, %v13
  %v130 = vpop.permute.xlu0 %129
  %132 = vset.pattern.permute.xlu0 2
  %133 = vperm.xlu0 %132, %v14
  %v134 = vpop.permute.xlu0 %133
  %136 = vset.pattern.permute.xlu0 2
  %137 = vperm.xlu0 %136, %v15
  %v138 = vpop.permute.xlu0 %137
  %140 = vset.pattern.permute.xlu0 2
  %141 = vperm.xlu0 %140, %v16
  %v142 = vpop.permute.xlu0 %141
  %144 = vset.pattern.permute.xlu0 2
  %145 = vperm.xlu0 %144, %v17
  %v146 = vpop.permute.xlu0 %145
  %148 = vset.pattern.permute.xlu0 2
  %149 = vperm.xlu0 %148, %v18
  %v150 = vpop.permute.xlu0 %149
  %v152 = vsel %vm119, %v122, 0.0
  %v153 = vsel %vm119, %v126, 0.0
  %v154 = vsel %vm119, %v130, 0.0
  %v155 = vsel %vm119, %v134, 0.0
  %v156 = vsel %vm119, %v138, 0.0
  %v157 = vsel %vm119, %v142, 0.0
  %v158 = vsel %vm119, %v146, 0.0
  %v159 = vsel %vm119, %v150, 0.0
  %v160 = vadd.f32 %v111, %v152
  %v161 = vadd.f32 %v112, %v153
  %v162 = vadd.f32 %v113, %v154
  %v163 = vadd.f32 %v114, %v155
  %v164 = vadd.f32 %v115, %v156
  %v165 = vadd.f32 %v116, %v157
  %v166 = vadd.f32 %v117, %v158
  %v167 = vadd.f32 %v118, %v159
  %vm168 = vcmp.eq.s32.totalorder %v20, 3
  %169 = vset.pattern.permute.xlu0 3
  %170 = vperm.xlu0 %169, %v11
  %v171 = vpop.permute.xlu0 %170
  %173 = vset.pattern.permute.xlu0 3
  %174 = vperm.xlu0 %173, %v12
  %v175 = vpop.permute.xlu0 %174
  %177 = vset.pattern.permute.xlu0 3
  %178 = vperm.xlu0 %177, %v13
  %v179 = vpop.permute.xlu0 %178
  %181 = vset.pattern.permute.xlu0 3
  %182 = vperm.xlu0 %181, %v14
  %v183 = vpop.permute.xlu0 %182
  %185 = vset.pattern.permute.xlu0 3
  %186 = vperm.xlu0 %185, %v15
  %v187 = vpop.permute.xlu0 %186
  %189 = vset.pattern.permute.xlu0 3
  %190 = vperm.xlu0 %189, %v16
  %v191 = vpop.permute.xlu0 %190
  %193 = vset.pattern.permute.xlu0 3
  %194 = vperm.xlu0 %193, %v17
  %v195 = vpop.permute.xlu0 %194
  %197 = vset.pattern.permute.xlu0 3
  %198 = vperm.xlu0 %197, %v18
  %v199 = vpop.permute.xlu0 %198
  %v201 = vsel %vm168, %v171, 0.0
  %v202 = vsel %vm168, %v175, 0.0
  %v203 = vsel %vm168, %v179, 0.0
  %v204 = vsel %vm168, %v183, 0.0
  %v205 = vsel %vm168, %v187, 0.0
  %v206 = vsel %vm168, %v191, 0.0
  %v207 = vsel %vm168, %v195, 0.0
  %v208 = vsel %vm168, %v199, 0.0
  %v209 = vadd.f32 %v160, %v201
  %v210 = vadd.f32 %v161, %v202
  %v211 = vadd.f32 %v162, %v203
  %v212 = vadd.f32 %v163, %v204
  %v213 = vadd.f32 %v164, %v205
  %v214 = vadd.f32 %v165, %v206
  %v215 = vadd.f32 %v166, %v207
  %v216 = vadd.f32 %v167, %v208
  %v217 = vld [vmem:[%s1] sm:$0xff]
  %v218 = vld [vmem:[%s1 + $0x8] sm:$0xff]
  %v219 = vld [vmem:[%s1 + $0x10] sm:$0xff]
  %v220 = vld [vmem:[%s1 + $0x18] sm:$0xff]
  %v221 = vld [vmem:[%s1 + $0x20] sm:$0xff]
  %v222 = vld [vmem:[%s1 + $0x28] sm:$0xff]
  %v223 = vld [vmem:[%s1 + $0x30] sm:$0xff]
  %v224 = vld [vmem:[%s1 + $0x38] sm:$0xff]
  %v225 = vadd.f32 %v217, %v209
  %v226 = vadd.f32 %v218, %v210
  %v227 = vadd.f32 %v219, %v211
  %v228 = vadd.f32 %v220, %v212
  %v229 = vadd.f32 %v221, %v213
  %v230 = vadd.f32 %v222, %v214
  %v231 = vadd.f32 %v223, %v215
  %v232 = vadd.f32 %v224, %v216
  %vm233 = vcmask 261120
  %234 = vst.msk [vmem:[%s2] sm:$0xff] %vm233, %v225
  %235 = vst.msk [vmem:[%s2 + $0x8] sm:$0xff] %vm233, %v226
  %236 = vst.msk [vmem:[%s2 + $0x10] sm:$0xff] %vm233, %v227
  %237 = vst.msk [vmem:[%s2 + $0x18] sm:$0xff] %vm233, %v228
  %238 = vst.msk [vmem:[%s2 + $0x20] sm:$0xff] %vm233, %v229
  %239 = vst.msk [vmem:[%s2 + $0x28] sm:$0xff] %vm233, %v230
  %240 = vst.msk [vmem:[%s2 + $0x30] sm:$0xff] %vm233, %v231
  %241 = vst.msk [vmem:[%s2 + $0x38] sm:$0xff] %vm233, %v232
  // Predicated region
  $region10: #{tpu_custom_call.1} parent=0 // pred_check
    _
  $region11: #{tpu_custom_call.1} parent=0 // pred_check_branch
    %243 = sbr.rel (0) target = $region13
  $region12: #{tpu_custom_call.1} parent=0 // pred_region
    _
  $region13: #{tpu_custom_call.1} parent=0 // pred_fallthru
    _
  // Predicated region
  $region14: #{tpu_custom_call.1} parent=0 // pred_check
    _
  $region15: #{tpu_custom_call.1} parent=0 // pred_check_branch
    %245 = sbr.rel (0) target = $region17
  $region16: #{tpu_custom_call.1} parent=0 // pred_region
    _
  $region17: #{tpu_custom_call.1} parent=0 // pred_fallthru
    _

</llo_original>
